<compile_context>
chip_gen: v7x
topology: tpu7x:2x2x1
jax: 0.10.0
libtpu: 0.0.40
codegen_flags: <defaults>
</compile_context>

<pallas_src>
import functools

import jax
import jax.numpy as jnp
import numpy as np
from jax.experimental import pallas as pl
from jax.experimental.pallas import tpu as pltpu


def _round_up(x, m):
    return ((x + m - 1) // m) * m


def _vmem_capacity_bytes():
    try:
        cap = int(getattr(pltpu.get_tpu_info(), "vmem_capacity_bytes",
                          64 * 1024 * 1024))
        if cap <= 0:
            cap = 64 * 1024 * 1024
    except Exception:
        cap = 64 * 1024 * 1024  # conservative fallback (v7x-sized)
    return cap


def _vmem_budget_bytes():
    return int(_vmem_capacity_bytes() * 0.8)


# ----------------------------------------------------------------------------
# One-time weight preparation (weight-load time, NOT per forward call).
# ----------------------------------------------------------------------------
def prepare_mlp_weights(w_gate, w_up, w_down, *, tf=None):
    """Fuse nn.Linear weights for the kernel.

    w_gate, w_up: (F, H) in nn.Linear (out_features, in_features) layout.
    w_down:       (H, F).

    Returns (w_gu, w_d, tf) where
      w_gu: (H, 2*F_pad), F-tile k stored as [gate_k | up_k]  (width 2*tf)
      w_d : (F_pad, H)
    F is zero-padded to a multiple of tf; padded columns are exactly neutral
    (silu(0) * 0 = 0 and zero down-proj rows).
    """
    F, H = w_gate.shape
    if tf is None:
        cap = _vmem_capacity_bytes()
        max_tf = 512 if cap <= 64 * 1024 * 1024 else 1024  # v7x vs v5e/v6e
        tf = min(max_tf, _round_up(F, 128))
    assert tf % 128 == 0, "tf must be a multiple of 128 (lane alignment)"

    F_pad = _round_up(F, tf)
    if F_pad != F:
        pad = F_pad - F
        w_gate = jnp.pad(w_gate, ((0, pad), (0, 0)))
        w_up = jnp.pad(w_up, ((0, pad), (0, 0)))
        w_down = jnp.pad(w_down, ((0, 0), (0, pad)))

    n_f = F_pad // tf
    wg_t = jnp.transpose(w_gate).reshape(H, n_f, tf)   # (H, n_f, tf)
    wu_t = jnp.transpose(w_up).reshape(H, n_f, tf)     # (H, n_f, tf)
    w_gu = jnp.concatenate([wg_t, wu_t], axis=-1).reshape(H, 2 * F_pad)
    w_d = jnp.transpose(w_down)                        # (F_pad, H)
    return w_gu, w_d, tf


# ----------------------------------------------------------------------------
# Kernels
# ----------------------------------------------------------------------------
def _swiglu_partial(x_ref, wgu_ref, wd_ref):
    """One F-tile: fused gate|up matmul, f32 SwiGLU epilogue, down matmul."""
    x = x_ref[...]                                    # native dtype for the MXU
    gu = jnp.dot(x, wgu_ref[...], preferred_element_type=jnp.float32)  # (tm,2tf)
    tf = wgu_ref.shape[1] // 2
    gate = gu[:, :tf]
    up = gu[:, tf:]
    h = (gate * jax.nn.sigmoid(gate) * up).astype(x_ref.dtype)          # (tm,tf)
    return jnp.dot(h, wd_ref[...], preferred_element_type=jnp.float32)  # (tm,H)


def swiglu_mlp_kernel_acc(x_ref, wgu_ref, wd_ref, o_ref, acc_ref):
    """Non-f32 output: accumulate in an f32 VMEM scratch, cast at the end."""
    k = pl.program_id(1)
    partial = _swiglu_partial(x_ref, wgu_ref, wd_ref)

    @pl.when(k == 0)
    def _first():
        acc_ref[...] = partial          # direct store, no zero-init round trip

    @pl.when(k > 0)
    def _rest():
        acc_ref[...] += partial

    @pl.when(k == pl.num_programs(1) - 1)
    def _store():
        o_ref[...] = acc_ref[...].astype(o_ref.dtype)


def swiglu_mlp_kernel_inplace(x_ref, wgu_ref, wd_ref, o_ref):
    """f32 output: accumulate directly into the resident output block."""
    k = pl.program_id(1)
    partial = _swiglu_partial(x_ref, wgu_ref, wd_ref)

    @pl.when(k == 0)
    def _first():
        o_ref[...] = partial

    @pl.when(k > 0)
    def _rest():
        o_ref[...] += partial


# ----------------------------------------------------------------------------
# Forward wrapper (hot path: no weight re-layout here)
# ----------------------------------------------------------------------------
def _pick_tm(N, H, tf, *, x_bytes, w_bytes, out_bytes, use_scratch, budget):
    cap = min(_round_up(max(N, 1), 8), 1024)
    for cand in (1024, 512, 256, 128, 64, 32, 16, 8):
        tm = min(cand, cap)
        need = (2 * tm * H * x_bytes            # token tile, double-buffered
                + 2 * H * 2 * tf * w_bytes      # fused gate|up tile
                + 2 * tf * H * w_bytes          # down-proj tile
                + 2 * tm * H * out_bytes        # output tile
                + (tm * H * 4 if use_scratch else 0))
        if need <= int(budget * 0.75) or tm <= 8:
            return tm
    return 8


@functools.partial(jax.jit, static_argnames=("tf", "tm", "weight_buffers"))
def mlp_forward(x, w_gu, w_d, *, tf, tm=None, weight_buffers=2):
    """x: (..., H).  w_gu/w_d from prepare_mlp_weights (done once at load)."""
    orig_shape = x.shape
    H = orig_shape[-1]
    F_pad = w_d.shape[0]
    assert w_gu.shape == (H, 2 * F_pad)
    assert tf % 128 == 0 and F_pad % tf == 0
    n_f = F_pad // tf

    tokens = x.reshape(-1, H)
    N = tokens.shape[0]

    out_dtype = x.dtype
    accumulate_in_out = (out_dtype == jnp.float32)
    budget = _vmem_budget_bytes()

    if tm is None:
        tm = _pick_tm(N, H, tf,
                      x_bytes=tokens.dtype.itemsize,
                      w_bytes=w_gu.dtype.itemsize,
                      out_bytes=x.dtype.itemsize,
                      use_scratch=not accumulate_in_out,
                      budget=budget)
    tm = max(8, min(tm, _round_up(N, 8)))
    tm = _round_up(tm, 8)

    N_pad = _round_up(N, tm)
    if N_pad != N:
        tokens = jnp.pad(tokens, ((0, N_pad - N), (0, 0)))

    w_kwargs = {}
    if weight_buffers != 2:
        w_kwargs = dict(pipeline_mode=pl.Buffered(weight_buffers))

    in_specs = [
        pl.BlockSpec((tm, H), lambda i, k: (i, 0)),                 # token tile
        pl.BlockSpec((H, 2 * tf), lambda i, k: (0, k), **w_kwargs),  # gate|up tile
        pl.BlockSpec((tf, H), lambda i, k: (k, 0), **w_kwargs),      # down tile
    ]
    out_spec = pl.BlockSpec((tm, H), lambda i, k: (i, 0))

    if accumulate_in_out:
        kernel = swiglu_mlp_kernel_inplace
        scratch = []
    else:
        kernel = swiglu_mlp_kernel_acc
        scratch = [pltpu.VMEM((tm, H), jnp.float32)]

    out = pl.pallas_call(
        kernel,
        out_shape=jax.ShapeDtypeStruct((N_pad, H), out_dtype),
        grid_spec=pltpu.PrefetchScalarGridSpec(
            num_scalar_prefetch=0,
            grid=(N_pad // tm, n_f),               # reduction (F) axis last
            in_specs=in_specs,
            out_specs=out_spec,
            scratch_shapes=scratch,
        ),
        compiler_params=pltpu.CompilerParams(
            dimension_semantics=("parallel", "arbitrary"),
            vmem_limit_bytes=budget,
        ),
    )(tokens, w_gu, w_d)

    return out[:N].reshape(orig_shape)


# ----------------------------------------------------------------------------
# Reference (mirrors the module and the kernel's dtype policy)
# ----------------------------------------------------------------------------
def reference_forward(x, w_gate, w_up, w_down):
    g = jnp.einsum("...h,fh->...f", x, w_gate, preferred_element_type=jnp.float32)
    u = jnp.einsum("...h,fh->...f", x, w_up, preferred_element_type=jnp.float32)
    h = (g * jax.nn.sigmoid(g) * u).astype(x.dtype)
    o = jnp.einsum("...f,hf->...h", h, w_down, preferred_element_type=jnp.float32)
    return o.astype(x.dtype)


if __name__ == "__main__":
    # Small shapes consistent with the module: batch=2, seq=8, hidden_dim=32,
    # ffn_dim=256 (two F tiles of 128 -> exercises the accumulator path).
    B, S, H, F = 2, 8, 32, 256

    key = jax.random.PRNGKey(0)
    kx, kg, ku, kd = jax.random.split(key, 4)
    x = jax.random.normal(kx, (B, S, H), dtype=jnp.float32)
    # nn.Linear weight layout (out_features, in_features), bias=False:
    w_gate = jax.random.normal(kg, (F, H), dtype=jnp.float32) * 0.1
    w_up   = jax.random.normal(ku, (F, H), dtype=jnp.float32) * 0.1
    w_down = jax.random.normal(kd, (H, F), dtype=jnp.float32) * 0.1

    # One-time weight prep (done at load time, outside the per-token path).
    w_gu, w_d, tf = prepare_mlp_weights(w_gate, w_up, w_down, tf=128)

    # f32 path (in-place output accumulation, no scratch) — strict check.
    out = jax.block_until_ready(mlp_forward(x, w_gu, w_d, tf=tf))
    ref = reference_forward(x, w_gate, w_up, w_down)
    assert out.shape == (B, S, H)
    np.testing.assert_allclose(np.asarray(out), np.asarray(ref),
                               rtol=1e-4, atol=1e-4)

    # bf16 path (bf16 MXU operands, f32 scratch accumulator) — loose tolerance.
    xb = x.astype(jnp.bfloat16)
    w_gu_b, w_d_b, tf_b = prepare_mlp_weights(w_gate.astype(jnp.bfloat16),
                                              w_up.astype(jnp.bfloat16),
                                              w_down.astype(jnp.bfloat16),
                                              tf=128)
    out_b = jax.block_until_ready(mlp_forward(xb, w_gu_b, w_d_b, tf=tf_b))
    ref_b = reference_forward(xb, w_gate.astype(jnp.bfloat16),
                              w_up.astype(jnp.bfloat16),
                              w_down.astype(jnp.bfloat16))
    np.testing.assert_allclose(np.asarray(out_b, dtype=np.float32),
                               np.asarray(ref_b, dtype=np.float32),
                               rtol=5e-2, atol=5e-2)

    print("KERNEL_OK")
</pallas_src>

<mosaic_0001>
module attributes {stable_mosaic.version = 11 : i64} {
  func.func @swiglu_mlp_kernel_inplace(%arg0: i32, %arg1: i32, %arg2: memref<16x32xf32, #tpu.memory_space<vmem>>, %arg3: memref<32x256xf32, #tpu.memory_space<vmem>>, %arg4: memref<128x32xf32, #tpu.memory_space<vmem>>, %arg5: memref<16x32xf32, #tpu.memory_space<vmem>>) attributes {dimension_semantics = [#tpu.dimension_semantics<parallel>, #tpu.dimension_semantics<arbitrary>], iteration_bounds = array<i64: 1, 2>, scalar_prefetch = 0 : i64, scratch_operands = 0 : i64, tpu.core_type = #tpu.core_type<tc>, window_params = [{transform_indices = @transform_0, window_bounds = array<i64: 16, 32>}, {transform_indices = @transform_1, window_bounds = array<i64: 32, 256>}, {transform_indices = @transform_2, window_bounds = array<i64: 128, 32>}, {transform_indices = @transform_3, window_bounds = array<i64: 16, 32>}]} {
    %c0 = arith.constant 0 : index
    %c0_0 = arith.constant 0 : index
    %0 = vector.load %arg2[%c0, %c0_0] : memref<16x32xf32, #tpu.memory_space<vmem>>, vector<16x32xf32>
    %c0_1 = arith.constant 0 : index
    %c0_2 = arith.constant 0 : index
    %1 = vector.load %arg3[%c0_1, %c0_2] : memref<32x256xf32, #tpu.memory_space<vmem>>, vector<32x256xf32>
    %cst = arith.constant dense<0.000000e+00> : vector<16x256xf32>
    %2 = tpu.matmul %0, %1, %cst {dimension_numbers = #tpu.dot_dimension_numbers<[1], [0], [0], [1], [0, 0, 1, 1], [], []>} : vector<16x32xf32>, vector<32x256xf32>, vector<16x256xf32> -> vector<16x256xf32>
    %3 = vector.extract_strided_slice %2 {offsets = [0, 0], sizes = [16, 128], strides = [1, 1]} : vector<16x256xf32> to vector<16x128xf32>
    %4 = vector.extract_strided_slice %2 {offsets = [0, 128], sizes = [16, 128], strides = [1, 1]} : vector<16x256xf32> to vector<16x128xf32>
    %5 = arith.negf %3 : vector<16x128xf32>
    %6 = math.exp %5 : vector<16x128xf32>
    %cst_3 = arith.constant 1.000000e+00 : f32
    %7 = vector.broadcast %cst_3 : f32 to vector<16x128xf32>
    %8 = arith.addf %7, %6 : vector<16x128xf32>
    %9 = arith.divf %7, %8 : vector<16x128xf32>
    %10 = arith.mulf %3, %9 : vector<16x128xf32>
    %11 = arith.mulf %10, %4 : vector<16x128xf32>
    %c0_4 = arith.constant 0 : index
    %c0_5 = arith.constant 0 : index
    %12 = vector.load %arg4[%c0_4, %c0_5] : memref<128x32xf32, #tpu.memory_space<vmem>>, vector<128x32xf32>
    %cst_6 = arith.constant dense<0.000000e+00> : vector<16x32xf32>
    %13 = tpu.matmul %11, %12, %cst_6 {dimension_numbers = #tpu.dot_dimension_numbers<[1], [0], [0], [1], [0, 0, 1, 1], [], []>} : vector<16x128xf32>, vector<128x32xf32>, vector<16x32xf32> -> vector<16x32xf32>
    %c0_i32 = arith.constant 0 : i32
    %14 = arith.cmpi eq, %arg1, %c0_i32 : i32
    %15 = arith.extui %14 : i1 to i32
    %c0_i32_7 = arith.constant 0 : i32
    %16 = arith.cmpi ne, %15, %c0_i32_7 : i32
    scf.if %16 {
      %c0_10 = arith.constant 0 : index
      %c0_11 = arith.constant 0 : index
      %20 = vector.load %arg5[%c0_10, %c0_11] : memref<16x32xf32, #tpu.memory_space<vmem>>, vector<16x32xf32>
      tpu.vector_store %arg5[%c0_10, %c0_11], %13 {strides = array<i32>} : memref<16x32xf32, #tpu.memory_space<vmem>>, vector<16x32xf32>,
    } else {
    }
    %c0_i32_8 = arith.constant 0 : i32
    %17 = arith.cmpi sgt, %arg1, %c0_i32_8 : i32
    %18 = arith.extui %17 : i1 to i32
    %c0_i32_9 = arith.constant 0 : i32
    %19 = arith.cmpi ne, %18, %c0_i32_9 : i32
    scf.if %19 {
      %c0_10 = arith.constant 0 : index
      %c0_11 = arith.constant 0 : index
      %20 = vector.load %arg5[%c0_10, %c0_11] : memref<16x32xf32, #tpu.memory_space<vmem>>, vector<16x32xf32>
      %21 = arith.addf %20, %13 : vector<16x32xf32>
      %c0_12 = arith.constant 0 : index
      %c0_13 = arith.constant 0 : index
      %22 = vector.load %arg5[%c0_12, %c0_13] : memref<16x32xf32, #tpu.memory_space<vmem>>, vector<16x32xf32>
      tpu.vector_store %arg5[%c0_12, %c0_13], %21 {strides = array<i32>} : memref<16x32xf32, #tpu.memory_space<vmem>>, vector<16x32xf32>,
    } else {
    }
    return
  }
  func.func @transform_0(%arg0: i32, %arg1: i32) -> (i32, i32) {
    %c0_i32 = arith.constant 0 : i32
    %c0_i32_0 = arith.constant 0 : i32
    return %arg0, %c0_i32 : i32, i32
  }
  func.func @transform_1(%arg0: i32, %arg1: i32) -> (i32, i32) {
    %c0_i32 = arith.constant 0 : i32
    %c0_i32_0 = arith.constant 0 : i32
    return %c0_i32, %arg1 : i32, i32
  }
  func.func @transform_2(%arg0: i32, %arg1: i32) -> (i32, i32) {
    %c0_i32 = arith.constant 0 : i32
    %c0_i32_0 = arith.constant 0 : i32
    return %arg1, %c0_i32 : i32, i32
  }
  func.func @transform_3(%arg0: i32, %arg1: i32) -> (i32, i32) {
    %c0_i32 = arith.constant 0 : i32
    %c0_i32_0 = arith.constant 0 : i32
    return %arg0, %c0_i32 : i32, i32
  }
}

</mosaic_0001>

<llo_original>
// kernel: mlp_forward.1
$region0: #{mlp_forward.1}
  #allocation0 [shape = 'u32[]', space=smem, size = 0x4, offset = 0x4, fixed_abs, tag = 'smem constant byte address 0x4 - core index']
  #allocation1 [shape = 'u32[144,128]{1,0:T(1,128)}', space=vmem, size = 0x12000, scoped, tag = 'internal scratch']
  %s0 = inlined_call_operand.vmem [shape: f32[16,32], index: 0, kind: input, shape index: {}]
  %s1 = inlined_call_operand.vmem [shape: f32[32,512], index: 1, kind: input, shape index: {}]
  %s2 = inlined_call_operand.vmem [shape: f32[256,32], index: 2, kind: input, shape index: {}]
  %s3 = inlined_call_operand.hbm [shape: f32[16,32], index: 3, kind: output, shape index: {}]
  %s4 = sld [smem:[#allocation0]]
  $region76: #{mlp_forward.1} parent=0
    _
  %s6 = ssub.s32 1, %s4
  %s7 = scalar_select 0, %s6, %s4
  $region1: #{mlp_forward.1} parent=0
    #allocation2 [shape = 'u8[65536]{0}', space=vmem, size = 0x10000, scoped, tag = 'input window, operand 1']
    #allocation3 [shape = 'u8[8192]{0}', space=vmem, size = 0x2000, scoped, tag = 'output window, operand 0, single buffered']
    #allocation4 [shape = 's32[2]{0}', space=sflag, size = 0x8, scoped, tag = 'scoped memory for mlp_forward.1']
    %8 = vsyncpa [#allocation4], 0
    loop: start=0, step=1, limit=4
    $region2: #{mlp_forward.1} parent=1 // loop_pre_header
      _
    $region3: #{mlp_forward.1} parent=1 // loop_header
      %s10 = sphi 0, %s14
      %p11 = scmp.ge.s32.totalorder %s10, 4
      %s17 = sphi 0, %s29
      %s18 = sphi 0, %s25
      %s19 = sphi 0, %s17
      %s20 = sphi 0, %s18
      %s21 = sphi 0, %s19
      %s22 = sphi 0, %s20
      %s32 = sphi 0, %s34
      %s35 = sphi 0, %s32
      %s36 = sphi 0, %s35
      %s52 = sphi 0, %s36
      %s58 = sphi 0, %s60
      %s61 = sphi 0, %s58
      %s62 = sphi 0, %s61
      %s78 = sphi 0, %s62
      %s84 = sphi 0, %s86
      %s87 = sphi 0, %s84
      %s88 = sphi 0, %s87
      %s104 = sphi 0, %s88
      %s110 = sphi 0, %s112
      %s113 = sphi 0, %s110
      %s114 = sphi 0, %s113
      %s130 = sphi 0, %s114
    $region4: #{mlp_forward.1} parent=1 // loop_header_branch
      %13 = sbr.rel (%p11) target = $region8
    $region5: #{mlp_forward.1} parent=1 // loop_body
      %s15 = ssub.s32 %s10, 1
      %s16 = ssub.s32 %s10, 2
      %s23 = sadd.s32 1, %s18
      %p24 = scmp.ge.s32.totalorder %s23, 2
      %s25 = scalar_select %p24, 0, %s23
      %s26 = sadd.s32 1, %s17
      %s27 = scalar_select %p24, %s26, %s17
      %p28 = scmp.ge.s32.totalorder %s27, 1
      %s29 = scalar_select %p28, 0, %s27
      %s30 = ssub.s32 %s17, %s29
      %p31 = scmp.eq.s32.totalorder %s30, 0
      %s33 = sadd.s32 %s32, 1
      %s34 = scalar_select %p31, %s32, %s33
      %p37 = pneg %p31
      %p38 = scmp.eq.s32.totalorder %s10, 1
      %p39 = por %p37, %p38
      %p40 = scmp.ne.s32.totalorder %s32, %s35
      %p41 = scmp.eq.s32.totalorder %s10, 0
      %p42 = por %p40, %p41
      %p43 = scmp.ne.s32.totalorder %s32, %s35
      %p44 = scmp.eq.s32.totalorder %s15, 1
      %p45 = por %p43, %p44
      %p46 = scmp.ne.s32.totalorder %s35, %s36
      %p47 = scmp.eq.s32.totalorder %s15, 0
      %p48 = por %p46, %p47
      %p49 = scmp.ne.s32.totalorder %s35, %s36
      %p50 = scmp.eq.s32.totalorder %s16, 1
      %p51 = por %p49, %p50
      %p53 = scmp.ne.s32.totalorder %s36, %s52
      %p54 = scmp.eq.s32.totalorder %s16, 0
      %p55 = por %p53, %p54
      %s56 = ssub.s32 %s18, %s25
      %p57 = scmp.eq.s32.totalorder %s56, 0
      %s59 = sadd.s32 %s58, 1
      %s60 = scalar_select %p57, %s58, %s59
      %p63 = pneg %p57
      %p64 = scmp.eq.s32.totalorder %s10, 1
      %p65 = por %p63, %p64
      %p66 = scmp.ne.s32.totalorder %s58, %s61
      %p67 = scmp.eq.s32.totalorder %s10, 0
      %p68 = por %p66, %p67
      %p69 = scmp.ne.s32.totalorder %s58, %s61
      %p70 = scmp.eq.s32.totalorder %s15, 1
      %p71 = por %p69, %p70
      %p72 = scmp.ne.s32.totalorder %s61, %s62
      %p73 = scmp.eq.s32.totalorder %s15, 0
      %p74 = por %p72, %p73
      %p75 = scmp.ne.s32.totalorder %s61, %s62
      %p76 = scmp.eq.s32.totalorder %s16, 1
      %p77 = por %p75, %p76
      %p79 = scmp.ne.s32.totalorder %s62, %s78
      %p80 = scmp.eq.s32.totalorder %s16, 0
      %p81 = por %p79, %p80
      %s82 = ssub.s32 %s18, %s25
      %p83 = scmp.eq.s32.totalorder %s82, 0
      %s85 = sadd.s32 %s84, 1
      %s86 = scalar_select %p83, %s84, %s85
      %p89 = pneg %p83
      %p90 = scmp.eq.s32.totalorder %s10, 1
      %p91 = por %p89, %p90
      %p92 = scmp.ne.s32.totalorder %s84, %s87
      %p93 = scmp.eq.s32.totalorder %s10, 0
      %p94 = por %p92, %p93
      %p95 = scmp.ne.s32.totalorder %s84, %s87
      %p96 = scmp.eq.s32.totalorder %s15, 1
      %p97 = por %p95, %p96
      %p98 = scmp.ne.s32.totalorder %s87, %s88
      %p99 = scmp.eq.s32.totalorder %s15, 0
      %p100 = por %p98, %p99
      %p101 = scmp.ne.s32.totalorder %s87, %s88
      %p102 = scmp.eq.s32.totalorder %s16, 1
      %p103 = por %p101, %p102
      %p105 = scmp.ne.s32.totalorder %s88, %s104
      %p106 = scmp.eq.s32.totalorder %s16, 0
      %p107 = por %p105, %p106
      %s108 = ssub.s32 %s17, %s29
      %p109 = scmp.eq.s32.totalorder %s108, 0
      %s111 = sadd.s32 %s110, 1
      %s112 = scalar_select %p109, %s110, %s111
      %p115 = pneg %p109
      %p116 = scmp.eq.s32.totalorder %s10, 1
      %p117 = por %p115, %p116
      %p118 = scmp.ne.s32.totalorder %s110, %s113
      %p119 = scmp.eq.s32.totalorder %s10, 0
      %p120 = por %p118, %p119
      %p121 = scmp.ne.s32.totalorder %s110, %s113
      %p122 = scmp.eq.s32.totalorder %s15, 1
      %p123 = por %p121, %p122
      %p124 = scmp.ne.s32.totalorder %s113, %s114
      %p125 = scmp.eq.s32.totalorder %s15, 0
      %p126 = por %p124, %p125
      %p127 = scmp.ne.s32.totalorder %s113, %s114
      %p128 = scmp.eq.s32.totalorder %s16, 1
      %p129 = por %p127, %p128
      %p131 = scmp.ne.s32.totalorder %s114, %s130
      %p132 = scmp.eq.s32.totalorder %s16, 0
      %p133 = por %p131, %p132
      %p134 = scmp.le.s32.totalorder 1, %s10
      %p135 = scmp.lt.s32.totalorder %s10, 3
      %p136 = pnand %p134, %p135
      %p137 = pneg %p136
      // Predicated region
      $region9: #{mlp_forward.1} parent=5 // pred_check
        _
      $region10: #{mlp_forward.1} parent=5 // pred_check_branch
        %139 = sbr.rel (%p136) target = $region12
      $region11: #{mlp_forward.1} parent=5 // pred_region
        %s140 = ssub.s32 %s10, 1
        // Predicated region
        $region13: #{mlp_forward.1} parent=11 // pred_check
          %p141 = pneg %p48
        $region14: #{mlp_forward.1} parent=11 // pred_check_branch
          %143 = sbr.rel (%p141) target = $region16
        $region15: #{mlp_forward.1} parent=11 // pred_region
          %s144 = smul.u32 2, %s19
          %p145 = scmp.lt.s32.totalorder %s144, 1
          %s146 = scalar_select %p145, %s144, 1
          %s147 = smul.addr %s146, 8
          %s148 = scalar_lea.vmem %s0, %s147
          %s149 = smul.u32 2, %s19
        $region16: #{mlp_forward.1} parent=11 // pred_fallthru
          _
      $region12: #{mlp_forward.1} parent=5 // pred_fallthru
        _
      %p150 = scmp.lt.s32.totalorder %s10, 2
      // Predicated region
      $region17: #{mlp_forward.1} parent=5 // pred_check
        %p151 = pneg %p150
      $region18: #{mlp_forward.1} parent=5 // pred_check_branch
        %153 = sbr.rel (%p151) target = $region20
      $region19: #{mlp_forward.1} parent=5 // pred_region
        // Predicated region
        $region21: #{mlp_forward.1} parent=19 // pred_check
          %p154 = pneg %p68
        $region22: #{mlp_forward.1} parent=19 // pred_check_branch
          %156 = sbr.rel (%p154) target = $region24
        $region23: #{mlp_forward.1} parent=19 // pred_region
          %s157 = sand.u32 %s58, 1
          %s158 = sand.u32 %s58, 1
          %s159 = smul.addr %s158, 64
          %s160 = scalar_lea.vmem [#allocation2], %s159
          %s161 = smul.u32 2, %s18
          %s162 = smul.addr %s161, 8
          %s163 = scalar_lea.vmem %s1, %s162
          // Predicated region
          $region25: #{mlp_forward.1} parent=23 // pred_check
            _
          $region26: #{mlp_forward.1} parent=23 // pred_check_branch
            %165 = sbr.rel (0) target = $region28
          $region27: #{mlp_forward.1} parent=23 // pred_region
            // Predicated region
            $region29: #{mlp_forward.1} parent=27 // pred_check
              _
            $region30: #{mlp_forward.1} parent=27 // pred_check_branch
              %167 = sbr.rel (0) target = $region32
            $region31: #{mlp_forward.1} parent=27 // pred_region
              loop: start=0, step=1, limit=1
              $region33: #{mlp_forward.1} parent=31 // loop_pre_header
                _
              $region34: #{mlp_forward.1} parent=31 // loop_header
                %s169 = sphi 0, %s173
                %p170 = scmp.ge.s32.totalorder %s169, 1
                %s174 = sphi %s163, %s163
                %s175 = sphi %s160, %s160
              $region35: #{mlp_forward.1} parent=31 // loop_header_branch
                %172 = sbr.rel (%p170) target = $region39
              $region36: #{mlp_forward.1} parent=31 // loop_body
                %v176 = vld [vmem:[%s174] sm:$0xff]
                %177 = vst [vmem:[%s175] sm:$0xff] %v176
                %v178 = vld [vmem:[%s174 + $0x8] sm:$0xff]
                %179 = vst [vmem:[%s175 + $0x8] sm:$0xff] %v178
                %v180 = vld [vmem:[%s174 + $0x20] sm:$0xff]
                %181 = vst [vmem:[%s175 + $0x10] sm:$0xff] %v180
                %v182 = vld [vmem:[%s174 + $0x28] sm:$0xff]
                %183 = vst [vmem:[%s175 + $0x18] sm:$0xff] %v182
                %v184 = vld [vmem:[%s174 + $0x40] sm:$0xff]
                %185 = vst [vmem:[%s175 + $0x20] sm:$0xff] %v184
                %v186 = vld [vmem:[%s174 + $0x48] sm:$0xff]
                %187 = vst [vmem:[%s175 + $0x28] sm:$0xff] %v186
                %v188 = vld [vmem:[%s174 + $0x60] sm:$0xff]
                %189 = vst [vmem:[%s175 + $0x30] sm:$0xff] %v188
                %v190 = vld [vmem:[%s174 + $0x68] sm:$0xff]
                %191 = vst [vmem:[%s175 + $0x38] sm:$0xff] %v190
              $region37: #{mlp_forward.1} parent=31 // loop_footer
                %s173 = sadd.s32 1, %s169
              $region38: #{mlp_forward.1} parent=31 // loop_footer_branch
                %168 = sbr.rel target = $region34
              $region39: #{mlp_forward.1} parent=31 // loop_exit
                _
            $region32: #{mlp_forward.1} parent=27 // pred_fallthru
              _
            // Predicated region
            $region40: #{mlp_forward.1} parent=27 // pred_check
              _
            $region41: #{mlp_forward.1} parent=27 // pred_check_branch
              %193 = sbr.rel target = $region43
            $region42: #{mlp_forward.1} parent=27 // pred_region
              _
            $region43: #{mlp_forward.1} parent=27 // pred_fallthru
              _
          $region28: #{mlp_forward.1} parent=23 // pred_fallthru
            _
          %194 = vnop
        $region24: #{mlp_forward.1} parent=19 // pred_fallthru
          _
        // Predicated region
        $region44: #{mlp_forward.1} parent=19 // pred_check
          %p195 = pneg %p94
        $region45: #{mlp_forward.1} parent=19 // pred_check_branch
          %197 = sbr.rel (%p195) target = $region47
        $region46: #{mlp_forward.1} parent=19 // pred_region
          %s198 = smul.u32 16, %s18
          %p199 = scmp.lt.s32.totalorder %s198, 31
          %s200 = scalar_select %p199, %s198, 31
          %s201 = smul.addr %s200, 8
          %s202 = scalar_lea.vmem %s2, %s201
          %s203 = smul.u32 16, %s18
        $region47: #{mlp_forward.1} parent=19 // pred_fallthru
          _
      $region20: #{mlp_forward.1} parent=5 // pred_fallthru
        _
      %p204 = scmp.le.s32.totalorder 1, %s10
      %p205 = scmp.lt.s32.totalorder %s10, 3
      %p206 = pnand %p204, %p205
      %p207 = pneg %p206
      // Predicated region
      $region48: #{mlp_forward.1} parent=5 // pred_check
        _
      $region49: #{mlp_forward.1} parent=5 // pred_check_branch
        %209 = sbr.rel (%p206) target = $region51
      $region50: #{mlp_forward.1} parent=5 // pred_region
        %s210 = ssub.s32 %s10, 1
        %s211 = sand.u32 %s61, 1
        %s212 = sand.u32 %s61, 1
        %s213 = smul.addr %s212, 64
        %s214 = scalar_lea.vmem [#allocation2], %s213
        // Predicated region
        $region52: #{mlp_forward.1} parent=50 // pred_check
          %p215 = pneg %p74
        $region53: #{mlp_forward.1} parent=50 // pred_check_branch
          %217 = sbr.rel (%p215) target = $region55
        $region54: #{mlp_forward.1} parent=50 // pred_region
          _
        $region55: #{mlp_forward.1} parent=50 // pred_fallthru
          _
        %s218 = smul.u32 2, %s19
        %p219 = scmp.lt.s32.totalorder %s218, 1
        %s220 = scalar_select %p219, %s218, 1
        %s221 = smul.addr %s220, 8
        %s222 = scalar_lea.vmem %s0, %s221
        %p223 = pneg %p48
        %p224 = pneg %p45
        %s225 = sand.u32 %s61, 1
        %s226 = sand.u32 %s61, 1
        %s227 = smul.addr %s226, 64
        %s228 = scalar_lea.vmem [#allocation2], %s227
        %p229 = pneg %p74
        %p230 = pneg %p71
        %s231 = smul.u32 16, %s20
        %p232 = scmp.lt.s32.totalorder %s231, 31
        %s233 = scalar_select %p232, %s231, 31
        %s234 = smul.addr %s233, 8
        %s235 = scalar_lea.vmem %s2, %s234
        %p236 = pneg %p100
        %p237 = pneg %p97
        %p238 = pneg %p126
        %p239 = pneg %p123
        %s240 = smul.u32 2, %s19
        %p241 = scmp.lt.s32.totalorder %s240, 1
        %s242 = scalar_select %p241, %s240, 1
        %s243 = smul.addr %s242, 8
        %s244 = scalar_lea.vmem %s0, %s243
        %s245 = smul.u32 2, %s19
        %s246 = smul.u32 2, %s20
        %s247 = smul.u32 16, %s20
        %p248 = scmp.lt.s32.totalorder %s247, 31
        %s249 = scalar_select %p248, %s247, 31
        %s250 = smul.addr %s249, 8
        %s251 = scalar_lea.vmem %s2, %s250
        %s252 = smul.u32 16, %s20
        %s253 = smul.u32 2, %s19
        %v254 = vld [vmem:[%s244] sm:$0xff]
        %v255 = vld [vmem:[%s244 + $0x8] sm:$0xff]
        %v256 = vld [vmem:[%s214] sm:$0xff]
        %v257 = vld [vmem:[%s214 + $0x8] sm:$0xff]
        %v258 = vld [vmem:[%s214 + $0x10] sm:$0xff]
        %v259 = vld [vmem:[%s214 + $0x18] sm:$0xff]
        %v260 = vld [vmem:[%s214 + $0x20] sm:$0xff]
        %v261 = vld [vmem:[%s214 + $0x28] sm:$0xff]
        %v262 = vld [vmem:[%s214 + $0x30] sm:$0xff]
        %v263 = vld [vmem:[%s214 + $0x38] sm:$0xff]
        %vm264 = vcmask 261120
        %v266 = vsel %vm264, %v254, 0
        %v269 = vsel %vm264, %v255, 0
        %271 = vmatprep.subr.mxu0 %v257
        %272 = vmatpush1.msra.mxu0 %v256
        %273 = vmatprep.subr.mxu0 %v259
        %274 = vmatpush1.msra.mxu0 %v258
        %275 = vmatprep.subr.mxu0 %v261
        %276 = vmatpush1.msra.mxu0 %v260
        %277 = vmatprep.subr.mxu0 %v263
        %278 = vmatpush1.msra.mxu0 %v262
        %279 = vmatprep.subr.mxu0 0.0
        %280 = vmatpush1.msra.mxu0 0.0
        %281 = vmatprep.subr.mxu0 0.0
        %282 = vmatpush1.msra.mxu0 0.0
        %283 = vmatprep.subr.mxu0 0.0
        %284 = vmatpush1.msra.mxu0 0.0
        %285 = vmatprep.subr.mxu0 0.0
        %286 = vmatpush1.msra.mxu0 0.0
        %287 = vmatprep.subr.mxu0 0.0
        %288 = vmatpush1.msra.mxu0 0.0
        %289 = vmatprep.subr.mxu0 0.0
        %290 = vmatpush1.msra.mxu0 0.0
        %291 = vmatprep.subr.mxu0 0.0
        %292 = vmatpush1.msra.mxu0 0.0
        %293 = vmatprep.subr.mxu0 0.0
        %294 = vmatpush1.msra.mxu0 0.0
        %295 = vmatprep.subr.mxu0 0.0
        %296 = vmatpush1.msra.mxu0 0.0
        %297 = vmatprep.subr.mxu0 0.0
        %298 = vmatpush1.msra.mxu0 0.0
        %299 = vmatprep.subr.mxu0 0.0
        %300 = vmatpush1.msra.mxu0 0.0
        %301 = vmatprep.subr.mxu0 0.0
        %302 = vmatpush1.msra.mxu0 0.0
        %303 = vmatprep.subr.mxu0 0.0
        %304 = vmatpush1.msra.mxu0 0.0
        %305 = vmatprep.subr.mxu0 0.0
        %306 = vmatpush1.msra.mxu0 0.0
        %307 = vmatprep.subr.mxu0 0.0
        %308 = vmatpush1.msra.mxu0 0.0
        %309 = vmatprep.subr.mxu0 0.0
        %310 = vmatpush1.msra.mxu0 0.0
        %311 = vmatprep.subr.mxu0 0.0
        %312 = vmatpush1.msra.mxu0 0.0
        %313 = vmatprep.subr.mxu0 0.0
        %314 = vmatpush1.msra.mxu0 0.0
        %315 = vmatprep.subr.mxu0 0.0
        %316 = vmatpush1.msra.mxu0 0.0
        %317 = vmatprep.subr.mxu0 0.0
        %318 = vmatpush1.msra.mxu0 0.0
        %319 = vmatprep.subr.mxu0 0.0
        %320 = vmatpush1.msra.mxu0 0.0
        %321 = vmatprep.subr.mxu0 0.0
        %322 = vmatpush1.msra.mxu0 0.0
        %323 = vmatprep.subr.mxu0 0.0
        %324 = vmatpush1.msra.mxu0 0.0
        %325 = vmatprep.subr.mxu0 0.0
        %326 = vmatpush1.msra.mxu0 0.0
        %327 = vmatprep.subr.mxu0 0.0
        %328 = vmatpush1.msra.mxu0 0.0
        %329 = vmatprep.subr.mxu0 0.0
        %330 = vmatpush1.msra.mxu0 0.0
        %331 = vmatprep.subr.mxu0 0.0
        %332 = vmatpush1.msra.mxu0 0.0
        %333 = vmatprep.subr.mxu0 0.0
        %334 = vmatpush1.msra.mxu0 0.0
        %335 = vmatprep.mubr.f32.mxu0 0.0
        %336 = vmatmul.mubr.f32.gmra.mrb[0].mxu0 %v266
        %v337 = vpop.f32.mrb[0].mxu0
        %v338 = vadd.f32 0.0, %v337
        %v339 = vpop.f32.mrb[0].mxu0
        %v340 = vadd.f32 0.0, %v339
        %341 = vmatprep.mubr.f32.mxu0 0.0
        %342 = vmatmul.mubr.f32.gmra.mrb[0].mxu0 %v269
        %v343 = vpop.f32.mrb[0].mxu0
        %v344 = vadd.f32 0.0, %v343
        %v345 = vpop.f32.mrb[0].mxu0
        %v346 = vadd.f32 0.0, %v345
        %347 = vdwg.mxu0
        %v348 = vxor.u32 %v338, 2147483648
        %v349 = vxor.u32 %v344, 2147483648
        %v350 = vmul.f32 %v348, 1.442695
        %v351 = vpow.pop %v350
        %v352 = vmul.f32 %v349, 1.442695
        %v353 = vpow.pop %v352
        %v354 = vadd.f32 %v351, 1.0
        %v355 = vadd.f32 %v353, 1.0
        %v356 = vrcp.pop %v354
        %v357 = vmul.f32 1.0, %v356
        %v358 = vrcp.pop %v355
        %v359 = vmul.f32 1.0, %v358
        %v360 = vmul.f32 %v338, %v357
        %v361 = vmul.f32 %v344, %v359
        %v362 = vmul.f32 %v360, %v340
        %v363 = vmul.f32 %v361, %v346
        %v364 = vld [vmem:[%s251] sm:$0xff]
        %v365 = vld [vmem:[%s251 + $0x8] sm:$0xff]
        %v366 = vld [vmem:[%s251 + $0x10] sm:$0xff]
        %v367 = vld [vmem:[%s251 + $0x18] sm:$0xff]
        %v368 = vld [vmem:[%s251 + $0x20] sm:$0xff]
        %v369 = vld [vmem:[%s251 + $0x28] sm:$0xff]
        %v370 = vld [vmem:[%s251 + $0x30] sm:$0xff]
        %v371 = vld [vmem:[%s251 + $0x38] sm:$0xff]
        %v372 = vld [vmem:[%s251 + $0x40] sm:$0xff]
        %v373 = vld [vmem:[%s251 + $0x48] sm:$0xff]
        %v374 = vld [vmem:[%s251 + $0x50] sm:$0xff]
        %v375 = vld [vmem:[%s251 + $0x58] sm:$0xff]
        %v376 = vld [vmem:[%s251 + $0x60] sm:$0xff]
        %v377 = vld [vmem:[%s251 + $0x68] sm:$0xff]
        %v378 = vld [vmem:[%s251 + $0x70] sm:$0xff]
        %v379 = vld [vmem:[%s251 + $0x78] sm:$0xff]
        %380 = vmatprep.subr.mxu0 0.0
        %381 = vmatpush1.msra.mxu0 %v364
        %382 = vmatprep.subr.mxu0 0.0
        %383 = vmatpush1.msra.mxu0 %v365
        %384 = vmatprep.subr.mxu0 0.0
        %385 = vmatpush1.msra.mxu0 %v366
        %386 = vmatprep.subr.mxu0 0.0
        %387 = vmatpush1.msra.mxu0 %v367
        %388 = vmatprep.subr.mxu0 0.0
        %389 = vmatpush1.msra.mxu0 %v368
        %390 = vmatprep.subr.mxu0 0.0
        %391 = vmatpush1.msra.mxu0 %v369
        %392 = vmatprep.subr.mxu0 0.0
        %393 = vmatpush1.msra.mxu0 %v370
        %394 = vmatprep.subr.mxu0 0.0
        %395 = vmatpush1.msra.mxu0 %v371
        %396 = vmatprep.subr.mxu0 0.0
        %397 = vmatpush1.msra.mxu0 %v372
        %398 = vmatprep.subr.mxu0 0.0
        %399 = vmatpush1.msra.mxu0 %v373
        %400 = vmatprep.subr.mxu0 0.0
        %401 = vmatpush1.msra.mxu0 %v374
        %402 = vmatprep.subr.mxu0 0.0
        %403 = vmatpush1.msra.mxu0 %v375
        %404 = vmatprep.subr.mxu0 0.0
        %405 = vmatpush1.msra.mxu0 %v376
        %406 = vmatprep.subr.mxu0 0.0
        %407 = vmatpush1.msra.mxu0 %v377
        %408 = vmatprep.subr.mxu0 0.0
        %409 = vmatpush1.msra.mxu0 %v378
        %410 = vmatprep.subr.mxu0 0.0
        %411 = vmatpush1.msra.mxu0 %v379
        %412 = vmatprep.subr.mxu0 0.0
        %413 = vmatpush1.msra.mxu0 0.0
        %414 = vmatprep.subr.mxu0 0.0
        %415 = vmatpush1.msra.mxu0 0.0
        %416 = vmatprep.subr.mxu0 0.0
        %417 = vmatpush1.msra.mxu0 0.0
        %418 = vmatprep.subr.mxu0 0.0
        %419 = vmatpush1.msra.mxu0 0.0
        %420 = vmatprep.subr.mxu0 0.0
        %421 = vmatpush1.msra.mxu0 0.0
        %422 = vmatprep.subr.mxu0 0.0
        %423 = vmatpush1.msra.mxu0 0.0
        %424 = vmatprep.subr.mxu0 0.0
        %425 = vmatpush1.msra.mxu0 0.0
        %426 = vmatprep.subr.mxu0 0.0
        %427 = vmatpush1.msra.mxu0 0.0
        %428 = vmatprep.subr.mxu0 0.0
        %429 = vmatpush1.msra.mxu0 0.0
        %430 = vmatprep.subr.mxu0 0.0
        %431 = vmatpush1.msra.mxu0 0.0
        %432 = vmatprep.subr.mxu0 0.0
        %433 = vmatpush1.msra.mxu0 0.0
        %434 = vmatprep.subr.mxu0 0.0
        %435 = vmatpush1.msra.mxu0 0.0
        %436 = vmatprep.subr.mxu0 0.0
        %437 = vmatpush1.msra.mxu0 0.0
        %438 = vmatprep.subr.mxu0 0.0
        %439 = vmatpush1.msra.mxu0 0.0
        %440 = vmatprep.subr.mxu0 0.0
        %441 = vmatpush1.msra.mxu0 0.0
        %442 = vmatprep.subr.mxu0 0.0
        %443 = vmatpush1.msra.mxu0 0.0
        %444 = vmatprep.mubr.f32.mxu0 0.0
        %445 = vmatmul.mubr.f32.gmra.mrb[0].mxu0 %v362
        %v446 = vpop.f32.mrb[0].mxu0
        %v447 = vadd.f32 0.0, %v446
        %v448 = vpop.f32.mrb[0].mxu0
        %449 = vmatprep.mubr.f32.mxu0 0.0
        %450 = vmatmul.mubr.f32.gmra.mrb[0].mxu0 %v363
        %v451 = vpop.f32.mrb[0].mxu0
        %v452 = vadd.f32 0.0, %v451
        %v453 = vpop.f32.mrb[0].mxu0
        %454 = vdwg.mxu0
        %p455 = scmp.eq.s32.totalorder %s20, 0
        // Predicated region
        $region56: #{mlp_forward.1} parent=50 // pred_check
          %p456 = pneg %p455
        $region57: #{mlp_forward.1} parent=50 // pred_check_branch
          %458 = sbr.rel (%p456) target = $region59
        $region58: #{mlp_forward.1} parent=50 // pred_region
          %459 = vst.msk [vmem:[#allocation3] sm:$0xff] %vm264, %v447
          %460 = vst.msk [vmem:[#allocation3 + $0x8] sm:$0xff] %vm264, %v452
        $region59: #{mlp_forward.1} parent=50 // pred_fallthru
          _
        %p461 = scmp.gt.s32.totalorder %s20, 0
        // Predicated region
        $region60: #{mlp_forward.1} parent=50 // pred_check
          %p462 = pneg %p461
        $region61: #{mlp_forward.1} parent=50 // pred_check_branch
          %464 = sbr.rel (%p462) target = $region63
        $region62: #{mlp_forward.1} parent=50 // pred_region
          %v465 = vld [vmem:[#allocation3] sm:$0xff]
          %v466 = vld [vmem:[#allocation3 + $0x8] sm:$0xff]
          %v467 = vadd.f32 %v465, %v447
          %v468 = vadd.f32 %v466, %v452
          %469 = vst.msk [vmem:[#allocation3] sm:$0xff] %vm264, %v467
          %470 = vst.msk [vmem:[#allocation3 + $0x8] sm:$0xff] %vm264, %v468
        $region63: #{mlp_forward.1} parent=50 // pred_fallthru
          _
        // Predicated region
        $region64: #{mlp_forward.1} parent=50 // pred_check
          %p471 = pneg %p123
        $region65: #{mlp_forward.1} parent=50 // pred_check_branch
          %473 = sbr.rel (%p471) target = $region67
        $region66: #{mlp_forward.1} parent=50 // pred_region
          %s474 = smul.u32 2, %s19
          %s476 = ssub.s32 256, 256
          %477 = vsyncadd [#allocation4], %s476
          %s478 = smul.addr %s474, 128
          %s479 = scalar_lea.hbm %s3, %s478
          %s480 = sshll.u32 [#allocation3], 4
          %s481 = int_to_ptr.vmem [resolvable:$true] %s480
          %486 = dma.vmem_to_hbm [thread:$0]  %s481, 256, %s479, [#allocation4], 128, 128, 8
        $region67: #{mlp_forward.1} parent=50 // pred_fallthru
          _
        // Predicated region
        $region68: #{mlp_forward.1} parent=50 // pred_check
          %p487 = pneg %p123
        $region69: #{mlp_forward.1} parent=50 // pred_check_branch
          %489 = sbr.rel (%p487) target = $region71
        $region70: #{mlp_forward.1} parent=50 // pred_region
          %490 = dma.done [#allocation4], 256
        $region71: #{mlp_forward.1} parent=50 // pred_fallthru
          _
      $region51: #{mlp_forward.1} parent=5 // pred_fallthru
        _
      %p491 = scmp.le.s32.totalorder 2, %s10
      // Predicated region
      $region72: #{mlp_forward.1} parent=5 // pred_check
        %p492 = pneg %p491
      $region73: #{mlp_forward.1} parent=5 // pred_check_branch
        %494 = sbr.rel (%p492) target = $region75
      $region74: #{mlp_forward.1} parent=5 // pred_region
        %s495 = ssub.s32 %s10, 2
      $region75: #{mlp_forward.1} parent=5 // pred_fallthru
        _
    $region6: #{mlp_forward.1} parent=1 // loop_footer
      %s14 = sadd.s32 1, %s10
    $region7: #{mlp_forward.1} parent=1 // loop_footer_branch
      %9 = sbr.rel target = $region3
    $region8: #{mlp_forward.1} parent=1 // loop_exit
      _
    %496 = vsyncpa [#allocation4], 1
    %s497 = scalar_lea.sflag [#allocation4], 1
    %498 = vsyncpa %s497, 1

</llo_original>
